<compile_context>
chip_gen: v7x
topology: tpu7x:2x2x1
jax: 0.10.0
libtpu: 0.0.40
codegen_flags: <defaults>
</compile_context>

<pallas_src>
import jax
import jax.numpy as jnp
from jax.experimental import pallas as pl
from jax.experimental.pallas import tpu as pltpu


def _round_up(x, m):
    return ((x + m - 1) // m) * m


def _value_mlp_kernel(x_ref, w1t_ref, b1_ref, w2t_ref, b2_ref, w3_ref, b3_ref,
                      out_ref):
    """Fused critic MLP on one batch tile (natural batch-major layout).

    x_ref  : (TB, D)   bf16   state tile (batch on sublanes, features on lanes)
    w1t_ref: (D, H)    bf16   fc1 weight, pre-transposed, resident
    b1_ref : (1, H)    f32    fc1 bias row, resident
    w2t_ref: (H, H)    bf16   fc2 weight, pre-transposed, resident
    b2_ref : (1, H)    f32    fc2 bias row, resident
    w3_ref : (1, H)    f32    fc3 weight row, resident
    b3_ref : (1,)      f32    fc3 bias scalar, SMEM
    out_ref: (TB, 1)   f32    per-row value for this tile
    """
    x = x_ref[...]                                                 # bf16

    # fc1: (TB, D) @ (D, H) -> (TB, H), f32 accumulation on the MXU.
    h1 = jnp.dot(x, w1t_ref[...], preferred_element_type=jnp.float32)
    h1 = jnp.maximum(h1 + b1_ref[...], 0.0)                        # bias/ReLU in f32
    # dropout(p=0.2): identity in eval mode.

    # fc2: bf16 MXU inputs, f32 accumulation.
    h2 = jnp.dot(h1.astype(jnp.bfloat16), w2t_ref[...],
                 preferred_element_type=jnp.float32)
    h2 = jnp.maximum(h2 + b2_ref[...], 0.0)

    # fc3 (out_features=1): VPU multiply + lane (XLU) reduction instead of a
    # 1-output-lane MXU matmul.
    v = jnp.sum(h2 * w3_ref[...], axis=1, keepdims=True) + b3_ref[0]
    out_ref[...] = v.astype(out_ref.dtype)


def prepare_value_network_params(params):
    """One-time weight prep (hoisted out of the per-call path; cache this)."""
    w1, b1, w2, b2, w3, b3 = params        # PyTorch layout: w (out, in), b (out,)
    H = w1.shape[0]
    return (
        w1.T.astype(jnp.bfloat16),                    # (D, H)  fc1 weight, transposed
        b1.reshape(1, H).astype(jnp.float32),         # (1, H)
        w2.T.astype(jnp.bfloat16),                    # (H, H)  fc2 weight, transposed
        b2.reshape(1, H).astype(jnp.float32),         # (1, H)
        w3.reshape(1, H).astype(jnp.float32),         # (1, H)  fc3 weight row
        b3.reshape(1).astype(jnp.float32),            # (1,)    SMEM scalar
    )


def _choose_batch_tile(b_pad, batch_tile):
    """Largest multiple of 128 that divides b_pad, <= batch_tile, and (when
    possible) leaves n_tiles >= 2 so megacore can split the parallel axis."""
    nunits = b_pad // 128
    max_units = max(1, min(nunits, batch_tile // 128))
    if nunits >= 2:
        max_units = max(1, min(max_units, nunits // 2))
    best = 1
    for u in range(1, max_units + 1):
        if nunits % u == 0:
            best = u
    return best * 128


def value_network_forward(state, prepared_params, *, batch_tile=2048):
    """state: [B, state_dim] f32 -> value: [B, 1] f32 (eval-mode forward).

    `prepared_params` comes from prepare_value_network_params(raw_params).
    """
    w1t, b1_r, w2t, b2_r, w3_r, b3_s = prepared_params
    B, state_dim = state.shape
    d = state_dim                       # contraction dim stays unpadded
    H = w1t.shape[1]

    # Pad batch only to a 128-lane multiple; tile is a divisor of b_pad.
    b_pad = _round_up(B, 128)
    tb = _choose_batch_tile(b_pad, max(128, batch_tile))
    n_tiles = b_pad // tb

    # Only wrapper op on the hot path: tiny bf16 cast (+ batch pad if needed).
    x_b = state.astype(jnp.bfloat16)
    if b_pad != B:
        x_b = jnp.pad(x_b, ((0, b_pad - B), (0, 0)))

    def resident(shape):
        return pl.BlockSpec(shape, lambda i: (0, 0))   # stays in VMEM, no re-DMA

    flops = 2 * b_pad * (d * H + H * H + H)
    bytes_accessed = (b_pad * d * 2                    # bf16 state
                      + (d * H + H * H) * 2            # bf16 weights
                      + (3 * H + 1) * 4                # f32 biases / fc3 row
                      + b_pad * 4)                     # f32 output

    # Actual VMEM footprint (double-buffered state/out tiles + resident weights
    # + f32 intermediates), with 2x headroom instead of the 32 MiB default.
    vmem_est = (2 * tb * d * 2 + 2 * tb * 4
                + (d * H + H * H) * 2 + (3 * H + 1) * 4
                + 3 * tb * H * 4)
    vmem_limit = int(min(32 * 1024 * 1024, max(8 * 1024 * 1024, 2 * vmem_est)))

    out = pl.pallas_call(
        _value_mlp_kernel,
        out_shape=jax.ShapeDtypeStruct((b_pad, 1), jnp.float32),
        grid=(n_tiles,),
        in_specs=[
            pl.BlockSpec((tb, d), lambda i: (i, 0)),             # state (pipelined)
            resident((d, H)),                                    # W1^T
            resident((1, H)),                                    # b1
            resident((H, H)),                                    # W2^T
            resident((1, H)),                                    # b2
            resident((1, H)),                                    # w3 row
            pl.BlockSpec(memory_space=pltpu.MemorySpace.SMEM),   # b3 scalar
        ],
        out_specs=pl.BlockSpec((tb, 1), lambda i: (i, 0)),
        compiler_params=pltpu.CompilerParams(
            dimension_semantics=("parallel",),                   # megacore on v7x
            vmem_limit_bytes=vmem_limit,
        ),
        cost_estimate=pl.CostEstimate(
            flops=flops, transcendentals=0, bytes_accessed=bytes_accessed),
    )(x_b, w1t, b1_r, w2t, b2_r, w3_r, b3_s)

    # Drop batch padding (padded rows compute garbage that is discarded here).
    return out[:B]


def init_value_network_params(key, state_dim, hidden_dim=128):
    """nn.Linear-style init: uniform(-1/sqrt(fan_in), 1/sqrt(fan_in)), PyTorch layout."""
    ks = jax.random.split(key, 6)

    def linear(kw, kb, fan_in, fan_out):
        bound = 1.0 / (fan_in ** 0.5)
        w = jax.random.uniform(kw, (fan_out, fan_in), jnp.float32, -bound, bound)
        b = jax.random.uniform(kb, (fan_out,), jnp.float32, -bound, bound)
        return w, b

    w1, b1 = linear(ks[0], ks[1], state_dim, hidden_dim)
    w2, b2 = linear(ks[2], ks[3], hidden_dim, hidden_dim)
    w3, b3 = linear(ks[4], ks[5], hidden_dim, 1)
    return (w1, b1, w2, b2, w3, b3)


def value_network_ref(state, params, *, mxu_bf16=False):
    """Pure-JAX reference of the PyTorch forward (eval mode).

    mxu_bf16=True mirrors the kernel's bf16-input / f32-accumulation matmuls.
    """
    w1, b1, w2, b2, w3, b3 = params
    cast = (lambda a: a.astype(jnp.bfloat16)) if mxu_bf16 else (lambda a: a)
    h = jnp.maximum(
        jnp.dot(cast(state), cast(w1).T, preferred_element_type=jnp.float32) + b1, 0.0)
    h = jnp.maximum(
        jnp.dot(cast(h), cast(w2).T, preferred_element_type=jnp.float32) + b2, 0.0)
    return jnp.dot(h, w3.T, preferred_element_type=jnp.float32) + b3


if __name__ == "__main__":
    key = jax.random.PRNGKey(0)
    k_params, k_state = jax.random.split(key)

    B, STATE_DIM, HIDDEN_DIM = 8, 16, 128   # module default hidden_dim=128
    params = init_value_network_params(k_params, STATE_DIM, HIDDEN_DIM)
    prepared = prepare_value_network_params(params)   # one-time, cached across calls
    state = jax.random.normal(k_state, (B, STATE_DIM), jnp.float32)

    value = value_network_forward(state, prepared)
    jax.block_until_ready(value)
    assert value.shape == (B, 1), value.shape

    # Exact-numerics reference (bf16 matmul inputs, f32 accumulation).
    ref_bf16 = value_network_ref(state, params, mxu_bf16=True)
    assert jnp.allclose(value, ref_bf16, atol=1e-3, rtol=1e-3), "mismatch vs bf16 reference"

    # Full-f32 PyTorch-semantics reference (loose tolerance for bf16 MXU inputs).
    ref_f32 = value_network_ref(state, params, mxu_bf16=False)
    assert jnp.allclose(value, ref_f32, atol=5e-2, rtol=5e-2), "mismatch vs f32 reference"

    print("KERNEL_OK")
</pallas_src>

<mosaic_0001>
module attributes {stable_mosaic.version = 11 : i64} {
  func.func @_value_mlp_kernel(%arg0: i32, %arg1: memref<128x16xbf16, #tpu.memory_space<vmem>>, %arg2: memref<16x128xbf16, #tpu.memory_space<vmem>>, %arg3: memref<1x128xf32, #tpu.memory_space<vmem>>, %arg4: memref<128x128xbf16, #tpu.memory_space<vmem>>, %arg5: memref<1x128xf32, #tpu.memory_space<vmem>>, %arg6: memref<1x128xf32, #tpu.memory_space<vmem>>, %arg7: memref<1xf32, #tpu.memory_space<smem>>, %arg8: memref<128x1xf32, #tpu.memory_space<vmem>>) attributes {dimension_semantics = [#tpu.dimension_semantics<parallel>], iteration_bounds = array<i64: 1>, scalar_prefetch = 0 : i64, scratch_operands = 0 : i64, tpu.core_type = #tpu.core_type<tc>, window_params = [{transform_indices = @transform_0, window_bounds = array<i64: 128, 16>}, {pipeline_mode = #tpu.pipeline_mode<synchronous>, transform_indices = @transform_1, window_bounds = array<i64: 16, 128>}, {pipeline_mode = #tpu.pipeline_mode<synchronous>, transform_indices = @transform_2, window_bounds = array<i64: 1, 128>}, {pipeline_mode = #tpu.pipeline_mode<synchronous>, transform_indices = @transform_3, window_bounds = array<i64: 128, 128>}, {pipeline_mode = #tpu.pipeline_mode<synchronous>, transform_indices = @transform_4, window_bounds = array<i64: 1, 128>}, {pipeline_mode = #tpu.pipeline_mode<synchronous>, transform_indices = @transform_5, window_bounds = array<i64: 1, 128>}, {transform_indices = @transform_6, window_bounds = array<i64: 1>}, {transform_indices = @transform_7, window_bounds = array<i64: 128, 1>}]} {
    %c0 = arith.constant 0 : index
    %c0_0 = arith.constant 0 : index
    %0 = vector.load %arg1[%c0, %c0_0] : memref<128x16xbf16, #tpu.memory_space<vmem>>, vector<128x16xbf16>
    %c0_1 = arith.constant 0 : index
    %c0_2 = arith.constant 0 : index
    %1 = vector.load %arg2[%c0_1, %c0_2] : memref<16x128xbf16, #tpu.memory_space<vmem>>, vector<16x128xbf16>
    %cst = arith.constant dense<0.000000e+00> : vector<128x128xf32>
    %2 = tpu.matmul %0, %1, %cst {dimension_numbers = #tpu.dot_dimension_numbers<[1], [0], [0], [1], [0, 0, 1, 1], [], []>} : vector<128x16xbf16>, vector<16x128xbf16>, vector<128x128xf32> -> vector<128x128xf32>
    %c0_3 = arith.constant 0 : index
    %c0_4 = arith.constant 0 : index
    %3 = vector.load %arg3[%c0_3, %c0_4] : memref<1x128xf32, #tpu.memory_space<vmem>>, vector<1x128xf32>
    %4 = vector.broadcast %3 : vector<1x128xf32> to vector<128x128xf32>
    %5 = arith.addf %2, %4 : vector<128x128xf32>
    %cst_5 = arith.constant 0.000000e+00 : f32
    %6 = vector.broadcast %cst_5 : f32 to vector<128x128xf32>
    %7 = arith.maximumf %5, %6 : vector<128x128xf32>
    %8 = arith.truncf %7 : vector<128x128xf32> to vector<128x128xbf16>
    %c0_6 = arith.constant 0 : index
    %c0_7 = arith.constant 0 : index
    %9 = vector.load %arg4[%c0_6, %c0_7] : memref<128x128xbf16, #tpu.memory_space<vmem>>, vector<128x128xbf16>
    %cst_8 = arith.constant dense<0.000000e+00> : vector<128x128xf32>
    %10 = tpu.matmul %8, %9, %cst_8 {dimension_numbers = #tpu.dot_dimension_numbers<[1], [0], [0], [1], [0, 0, 1, 1], [], []>} : vector<128x128xbf16>, vector<128x128xbf16>, vector<128x128xf32> -> vector<128x128xf32>
    %c0_9 = arith.constant 0 : index
    %c0_10 = arith.constant 0 : index
    %11 = vector.load %arg5[%c0_9, %c0_10] : memref<1x128xf32, #tpu.memory_space<vmem>>, vector<1x128xf32>
    %12 = vector.broadcast %11 : vector<1x128xf32> to vector<128x128xf32>
    %13 = arith.addf %10, %12 : vector<128x128xf32>
    %cst_11 = arith.constant 0.000000e+00 : f32
    %14 = vector.broadcast %cst_11 : f32 to vector<128x128xf32>
    %15 = arith.maximumf %13, %14 : vector<128x128xf32>
    %c0_12 = arith.constant 0 : index
    %c0_13 = arith.constant 0 : index
    %16 = vector.load %arg6[%c0_12, %c0_13] : memref<1x128xf32, #tpu.memory_space<vmem>>, vector<1x128xf32>
    %17 = vector.broadcast %16 : vector<1x128xf32> to vector<128x128xf32>
    %18 = arith.mulf %15, %17 : vector<128x128xf32>
    %cst_14 = arith.constant dense<0.000000e+00> : vector<128xf32>
    %19 = vector.multi_reduction <add>, %18, %cst_14 [1] : vector<128x128xf32> to vector<128xf32>
    %20 = vector.shape_cast %19 : vector<128xf32> to vector<128x1xf32>
    %c0_15 = arith.constant 0 : index
    %21 = memref.load %arg7[%c0_15] : memref<1xf32, #tpu.memory_space<smem>>
    %22 = vector.broadcast %21 : f32 to vector<128x1xf32>
    %23 = arith.addf %20, %22 : vector<128x1xf32>
    %c0_16 = arith.constant 0 : index
    %c0_17 = arith.constant 0 : index
    %24 = vector.load %arg8[%c0_16, %c0_17] : memref<128x1xf32, #tpu.memory_space<vmem>>, vector<128x1xf32>
    tpu.vector_store %arg8[%c0_16, %c0_17], %23 {strides = array<i32>} : memref<128x1xf32, #tpu.memory_space<vmem>>, vector<128x1xf32>,
    return
  }
  func.func @transform_0(%arg0: i32) -> (i32, i32) {
    %c0_i32 = arith.constant 0 : i32
    %c0_i32_0 = arith.constant 0 : i32
    return %arg0, %c0_i32 : i32, i32
  }
  func.func @transform_1(%arg0: i32) -> (i32, i32) {
    %c0_i32 = arith.constant 0 : i32
    %c0_i32_0 = arith.constant 0 : i32
    %c0_i32_1 = arith.constant 0 : i32
    return %c0_i32, %c0_i32_0 : i32, i32
  }
  func.func @transform_2(%arg0: i32) -> (i32, i32) {
    %c0_i32 = arith.constant 0 : i32
    %c0_i32_0 = arith.constant 0 : i32
    %c0_i32_1 = arith.constant 0 : i32
    return %c0_i32, %c0_i32_0 : i32, i32
  }
  func.func @transform_3(%arg0: i32) -> (i32, i32) {
    %c0_i32 = arith.constant 0 : i32
    %c0_i32_0 = arith.constant 0 : i32
    %c0_i32_1 = arith.constant 0 : i32
    return %c0_i32, %c0_i32_0 : i32, i32
  }
  func.func @transform_4(%arg0: i32) -> (i32, i32) {
    %c0_i32 = arith.constant 0 : i32
    %c0_i32_0 = arith.constant 0 : i32
    %c0_i32_1 = arith.constant 0 : i32
    return %c0_i32, %c0_i32_0 : i32, i32
  }
  func.func @transform_5(%arg0: i32) -> (i32, i32) {
    %c0_i32 = arith.constant 0 : i32
    %c0_i32_0 = arith.constant 0 : i32
    %c0_i32_1 = arith.constant 0 : i32
    return %c0_i32, %c0_i32_0 : i32, i32
  }
  func.func @transform_6(%arg0: i32) -> i32 {
    %c0_i32 = arith.constant 0 : i32
    %c0_i32_0 = arith.constant 0 : i32
    return %c0_i32 : i32
  }
  func.func @transform_7(%arg0: i32) -> (i32, i32) {
    %c0_i32 = arith.constant 0 : i32
    %c0_i32_0 = arith.constant 0 : i32
    return %arg0, %c0_i32 : i32, i32
  }
}

</mosaic_0001>

<llo_original>
// kernel: tpu_custom_call.1
$region0: #{tpu_custom_call.1}
  #allocation0 [shape = 'u32[]', space=smem, size = 0x4, offset = 0x4, fixed_abs, tag = 'smem constant byte address 0x4 - core index']
  #allocation1 [shape = 'u32[144,128]{1,0:T(1,128)}', space=vmem, size = 0x12000, scoped, tag = 'internal scratch']
  #allocation2 [shape = 'f32[1]{0:T(128)S(6)}', space=smem, size = 0x200, scoped, tag = 'scoped memory for tpu_custom_call.1']
  %s0 = inlined_call_operand.vmem [shape: bf16[128,16], index: 0, kind: input, shape index: {}]
  %s1 = inlined_call_operand.vmem [shape: bf16[16,128], index: 1, kind: input, shape index: {}]
  %s2 = inlined_call_operand.vmem [shape: f32[1,128], index: 2, kind: input, shape index: {}]
  %s3 = inlined_call_operand.vmem [shape: bf16[128,128], index: 3, kind: input, shape index: {}]
  %s4 = inlined_call_operand.vmem [shape: f32[1,128], index: 4, kind: input, shape index: {}]
  %s5 = inlined_call_operand.vmem [shape: f32[1,128], index: 5, kind: input, shape index: {}]
  %s6 = inlined_call_operand.<no memory space> [shape: f32[1], index: 6, kind: input, shape index: {}]
  %s7 = inlined_call_operand.vmem [shape: f32[128,1], index: 7, kind: output, shape index: {}]
  %s8 = sld [smem:[#allocation0]]
  $region38: #{tpu_custom_call.1} parent=0
    _
  %s10 = ssub.s32 1, %s8
  %s11 = scalar_select 0, %s10, %s8
  %12 = sst [smem:[#allocation2]] %s6
  // Predicated region
  $region2: #{tpu_custom_call.1} parent=0 // pred_check
    _
  $region3: #{tpu_custom_call.1} parent=0 // pred_check_branch
    %14 = sbr.rel (0) target = $region5
  $region4: #{tpu_custom_call.1} parent=0 // pred_region
    _
  $region5: #{tpu_custom_call.1} parent=0 // pred_fallthru
    _
  // Predicated region
  $region6: #{tpu_custom_call.1} parent=0 // pred_check
    _
  $region7: #{tpu_custom_call.1} parent=0 // pred_check_branch
    %16 = sbr.rel (0) target = $region9
  $region8: #{tpu_custom_call.1} parent=0 // pred_region
    _
  $region9: #{tpu_custom_call.1} parent=0 // pred_fallthru
    _
  // Predicated region
  $region10: #{tpu_custom_call.1} parent=0 // pred_check
    _
  $region11: #{tpu_custom_call.1} parent=0 // pred_check_branch
    %18 = sbr.rel (0) target = $region13
  $region12: #{tpu_custom_call.1} parent=0 // pred_region
    _
  $region13: #{tpu_custom_call.1} parent=0 // pred_fallthru
    _
  // Predicated region
  $region14: #{tpu_custom_call.1} parent=0 // pred_check
    _
  $region15: #{tpu_custom_call.1} parent=0 // pred_check_branch
    %20 = sbr.rel (0) target = $region17
  $region16: #{tpu_custom_call.1} parent=0 // pred_region
    _
  $region17: #{tpu_custom_call.1} parent=0 // pred_fallthru
    _
  // Predicated region
  $region18: #{tpu_custom_call.1} parent=0 // pred_check
    _
  $region19: #{tpu_custom_call.1} parent=0 // pred_check_branch
    %22 = sbr.rel (0) target = $region21
  $region20: #{tpu_custom_call.1} parent=0 // pred_region
    _
  $region21: #{tpu_custom_call.1} parent=0 // pred_fallthru
    _
  // Predicated region
  $region22: #{tpu_custom_call.1} parent=0 // pred_check
    _
  $region23: #{tpu_custom_call.1} parent=0 // pred_check_branch
    %24 = sbr.rel (0) target = $region25
  $region24: #{tpu_custom_call.1} parent=0 // pred_region
    _
  $region25: #{tpu_custom_call.1} parent=0 // pred_fallthru
    _
  // Predicated region
  $region26: #{tpu_custom_call.1} parent=0 // pred_check
    _
  $region27: #{tpu_custom_call.1} parent=0 // pred_check_branch
    %26 = sbr.rel (0) target = $region29
  $region28: #{tpu_custom_call.1} parent=0 // pred_region
    _
  $region29: #{tpu_custom_call.1} parent=0 // pred_fallthru
    _
  %v28 = vld [vmem:[%s0] sm:$0xf]
  %v29 = vld [vmem:[%s0 + $0x4] sm:$0xf]
  %v30 = vld [vmem:[%s0 + $0x8] sm:$0xf]
  %v31 = vld [vmem:[%s0 + $0xc] sm:$0xf]
  %v32 = vld [vmem:[%s0 + $0x10] sm:$0xf]
  %v33 = vld [vmem:[%s0 + $0x14] sm:$0xf]
  %v34 = vld [vmem:[%s0 + $0x18] sm:$0xf]
  %v35 = vld [vmem:[%s0 + $0x1c] sm:$0xf]
  %v36 = vld [vmem:[%s0 + $0x20] sm:$0xf]
  %v37 = vld [vmem:[%s0 + $0x24] sm:$0xf]
  %v38 = vld [vmem:[%s0 + $0x28] sm:$0xf]
  %v39 = vld [vmem:[%s0 + $0x2c] sm:$0xf]
  %v40 = vld [vmem:[%s0 + $0x30] sm:$0xf]
  %v41 = vld [vmem:[%s0 + $0x34] sm:$0xf]
  %v42 = vld [vmem:[%s0 + $0x38] sm:$0xf]
  %v43 = vld [vmem:[%s0 + $0x3c] sm:$0xf]
  %v44 = vld [vmem:[%s1] sm:$0xf]
  %v45 = vld [vmem:[%s1 + $0x4] sm:$0xf]
  %v46 = vld [vmem:[%s2] sm:$0x1]
  %v48 = vlaneseq
  %v49 = vshrl.u32 %v48, 7
  %v50 = vsub.s32 0, %v49
  %v51 = vrot.slane %v46, %v50
  %v69 = vunpack.c.l.b16 %v28
  %v70 = vunpack.c.l.b16 %v29
  %v71 = vunpack.c.l.b16 %v30
  %v72 = vunpack.c.l.b16 %v31
  %v73 = vunpack.c.l.b16 %v32
  %v74 = vunpack.c.l.b16 %v33
  %v75 = vunpack.c.l.b16 %v34
  %v76 = vunpack.c.l.b16 %v35
  %v77 = vunpack.c.l.b16 %v36
  %v78 = vunpack.c.l.b16 %v37
  %v79 = vunpack.c.l.b16 %v38
  %v80 = vunpack.c.l.b16 %v39
  %v81 = vunpack.c.l.b16 %v40
  %v82 = vunpack.c.l.b16 %v41
  %v83 = vunpack.c.l.b16 %v42
  %v84 = vunpack.c.l.b16 %v43
  %v85 = vpack.c.b16 %v70, %v69
  %v86 = vpack.c.b16 %v72, %v71
  %v87 = vpack.c.b16 %v74, %v73
  %v88 = vpack.c.b16 %v76, %v75
  %v89 = vpack.c.b16 %v78, %v77
  %v90 = vpack.c.b16 %v80, %v79
  %v91 = vpack.c.b16 %v82, %v81
  %v92 = vpack.c.b16 %v84, %v83
  %v95 = vunpack.c.l.b16 %v44
  %v96 = vunpack.c.l.b16 %v45
  %v97 = vpack.c.b16 %v96, %v95
  %vm99 = vcmask 130048
  %v101 = vsel %vm99, %v85, 0
  %v104 = vsel %vm99, %v86, 0
  %v107 = vsel %vm99, %v87, 0
  %v110 = vsel %vm99, %v88, 0
  %v113 = vsel %vm99, %v89, 0
  %v116 = vsel %vm99, %v90, 0
  %v119 = vsel %vm99, %v91, 0
  %v122 = vsel %vm99, %v92, 0
  %124 = vmatprep.subr.bf16.mxu0 0
  %125 = vmatpush1.bf16.msra.mxu0 %v97
  %126 = vmatprep.subr.bf16.mxu0 0
  %127 = vmatpush1.bf16.msra.mxu0 0
  %128 = vmatprep.subr.bf16.mxu0 0
  %129 = vmatpush1.bf16.msra.mxu0 0
  %130 = vmatprep.subr.bf16.mxu0 0
  %131 = vmatpush1.bf16.msra.mxu0 0
  %132 = vmatprep.subr.bf16.mxu0 0
  %133 = vmatpush1.bf16.msra.mxu0 0
  %134 = vmatprep.subr.bf16.mxu0 0
  %135 = vmatpush1.bf16.msra.mxu0 0
  %136 = vmatprep.subr.bf16.mxu0 0
  %137 = vmatpush1.bf16.msra.mxu0 0
  %138 = vmatprep.subr.bf16.mxu0 0
  %139 = vmatpush1.bf16.msra.mxu0 0
  %140 = vmatprep.subr.bf16.mxu0 0
  %141 = vmatpush1.bf16.msra.mxu0 0
  %142 = vmatprep.subr.bf16.mxu0 0
  %143 = vmatpush1.bf16.msra.mxu0 0
  %144 = vmatprep.subr.bf16.mxu0 0
  %145 = vmatpush1.bf16.msra.mxu0 0
  %146 = vmatprep.subr.bf16.mxu0 0
  %147 = vmatpush1.bf16.msra.mxu0 0
  %148 = vmatprep.subr.bf16.mxu0 0
  %149 = vmatpush1.bf16.msra.mxu0 0
  %150 = vmatprep.subr.bf16.mxu0 0
  %151 = vmatpush1.bf16.msra.mxu0 0
  %152 = vmatprep.subr.bf16.mxu0 0
  %153 = vmatpush1.bf16.msra.mxu0 0
  %154 = vmatprep.subr.bf16.mxu0 0
  %155 = vmatpush1.bf16.msra.mxu0 0
  %156 = vmatprep.mubr.bf16.mxu0 0
  %157 = vmatmul.mubr.bf16.gmra.mrb[0].mxu0 %v101
  %v158 = vpop.f32.mrb[0].mxu0
  %v159 = vadd.f32 %v51, %v158
  %v160 = vpop.f32.mrb[0].mxu0
  %v161 = vpop.f32.mrb[0].mxu0
  %v162 = vadd.f32 %v51, %v161
  %v163 = vpop.f32.mrb[0].mxu0
  %164 = vmatprep.mubr.bf16.mxu0 0
  %165 = vmatmul.mubr.bf16.gmra.mrb[0].mxu0 %v104
  %v166 = vpop.f32.mrb[0].mxu0
  %v167 = vadd.f32 %v51, %v166
  %v168 = vpop.f32.mrb[0].mxu0
  %v169 = vpop.f32.mrb[0].mxu0
  %v170 = vadd.f32 %v51, %v169
  %v171 = vpop.f32.mrb[0].mxu0
  %172 = vmatprep.mubr.bf16.mxu0 0
  %173 = vmatmul.mubr.bf16.gmra.mrb[0].mxu0 %v107
  %v174 = vpop.f32.mrb[0].mxu0
  %v175 = vadd.f32 %v51, %v174
  %v176 = vpop.f32.mrb[0].mxu0
  %v177 = vpop.f32.mrb[0].mxu0
  %v178 = vadd.f32 %v51, %v177
  %v179 = vpop.f32.mrb[0].mxu0
  %180 = vmatprep.mubr.bf16.mxu0 0
  %181 = vmatmul.mubr.bf16.gmra.mrb[0].mxu0 %v110
  %v182 = vpop.f32.mrb[0].mxu0
  %v183 = vadd.f32 %v51, %v182
  %v184 = vpop.f32.mrb[0].mxu0
  %v185 = vpop.f32.mrb[0].mxu0
  %v186 = vadd.f32 %v51, %v185
  %v187 = vpop.f32.mrb[0].mxu0
  %188 = vmatprep.mubr.bf16.mxu0 0
  %189 = vmatmul.mubr.bf16.gmra.mrb[0].mxu0 %v113
  %v190 = vpop.f32.mrb[0].mxu0
  %v191 = vadd.f32 %v51, %v190
  %v192 = vpop.f32.mrb[0].mxu0
  %v193 = vpop.f32.mrb[0].mxu0
  %v194 = vadd.f32 %v51, %v193
  %v195 = vpop.f32.mrb[0].mxu0
  %196 = vmatprep.mubr.bf16.mxu0 0
  %197 = vmatmul.mubr.bf16.gmra.mrb[0].mxu0 %v116
  %v198 = vpop.f32.mrb[0].mxu0
  %v199 = vadd.f32 %v51, %v198
  %v200 = vpop.f32.mrb[0].mxu0
  %v201 = vpop.f32.mrb[0].mxu0
  %v202 = vadd.f32 %v51, %v201
  %v203 = vpop.f32.mrb[0].mxu0
  %204 = vmatprep.mubr.bf16.mxu0 0
  %205 = vmatmul.mubr.bf16.gmra.mrb[0].mxu0 %v119
  %v206 = vpop.f32.mrb[0].mxu0
  %v207 = vadd.f32 %v51, %v206
  %v208 = vpop.f32.mrb[0].mxu0
  %v209 = vpop.f32.mrb[0].mxu0
  %v210 = vadd.f32 %v51, %v209
  %v211 = vpop.f32.mrb[0].mxu0
  %212 = vmatprep.mubr.bf16.mxu0 0
  %213 = vmatmul.mubr.bf16.gmra.mrb[0].mxu0 %v122
  %v214 = vpop.f32.mrb[0].mxu0
  %v215 = vadd.f32 %v51, %v214
  %v216 = vpop.f32.mrb[0].mxu0
  %v217 = vpop.f32.mrb[0].mxu0
  %v218 = vadd.f32 %v51, %v217
  %v219 = vpop.f32.mrb[0].mxu0
  %220 = vdwg.mxu0
  %v221 = vmax.f32 %v159, 0.0
  %v222 = vmax.f32 %v162, 0.0
  %v223 = vmax.f32 %v167, 0.0
  %v224 = vmax.f32 %v170, 0.0
  %v225 = vmax.f32 %v175, 0.0
  %v226 = vmax.f32 %v178, 0.0
  %v227 = vmax.f32 %v183, 0.0
  %v228 = vmax.f32 %v186, 0.0
  %v229 = vmax.f32 %v191, 0.0
  %v230 = vmax.f32 %v194, 0.0
  %v231 = vmax.f32 %v199, 0.0
  %v232 = vmax.f32 %v202, 0.0
  %v233 = vmax.f32 %v207, 0.0
  %v234 = vmax.f32 %v210, 0.0
  %v235 = vmax.f32 %v215, 0.0
  %v236 = vmax.f32 %v218, 0.0
  %v237 = vpack.c.bf16 %v222, %v221
  %v238 = vpack.c.bf16 %v224, %v223
  %v239 = vpack.c.bf16 %v226, %v225
  %v240 = vpack.c.bf16 %v228, %v227
  %v241 = vpack.c.bf16 %v230, %v229
  %v242 = vpack.c.bf16 %v232, %v231
  %v243 = vpack.c.bf16 %v234, %v233
  %v244 = vpack.c.bf16 %v236, %v235
  %v245 = vld [vmem:[%s3] sm:$0xf]
  %v246 = vld [vmem:[%s3 + $0x4] sm:$0xf]
  %v247 = vld [vmem:[%s3 + $0x8] sm:$0xf]
  %v248 = vld [vmem:[%s3 + $0xc] sm:$0xf]
  %v249 = vld [vmem:[%s3 + $0x10] sm:$0xf]
  %v250 = vld [vmem:[%s3 + $0x14] sm:$0xf]
  %v251 = vld [vmem:[%s3 + $0x18] sm:$0xf]
  %v252 = vld [vmem:[%s3 + $0x1c] sm:$0xf]
  %v253 = vld [vmem:[%s3 + $0x20] sm:$0xf]
  %v254 = vld [vmem:[%s3 + $0x24] sm:$0xf]
  %v255 = vld [vmem:[%s3 + $0x28] sm:$0xf]
  %v256 = vld [vmem:[%s3 + $0x2c] sm:$0xf]
  %v257 = vld [vmem:[%s3 + $0x30] sm:$0xf]
  %v258 = vld [vmem:[%s3 + $0x34] sm:$0xf]
  %v259 = vld [vmem:[%s3 + $0x38] sm:$0xf]
  %v260 = vld [vmem:[%s3 + $0x3c] sm:$0xf]
  %v261 = vld [vmem:[%s4] sm:$0x1]
  %v263 = vlaneseq
  %v264 = vshrl.u32 %v263, 7
  %v265 = vsub.s32 0, %v264
  %v266 = vrot.slane %v261, %v265
  %v284 = vunpack.c.l.b16 %v245
  %v285 = vunpack.c.l.b16 %v246
  %v286 = vunpack.c.l.b16 %v247
  %v287 = vunpack.c.l.b16 %v248
  %v288 = vunpack.c.l.b16 %v249
  %v289 = vunpack.c.l.b16 %v250
  %v290 = vunpack.c.l.b16 %v251
  %v291 = vunpack.c.l.b16 %v252
  %v292 = vunpack.c.l.b16 %v253
  %v293 = vunpack.c.l.b16 %v254
  %v294 = vunpack.c.l.b16 %v255
  %v295 = vunpack.c.l.b16 %v256
  %v296 = vunpack.c.l.b16 %v257
  %v297 = vunpack.c.l.b16 %v258
  %v298 = vunpack.c.l.b16 %v259
  %v299 = vunpack.c.l.b16 %v260
  %v300 = vpack.c.b16 %v285, %v284
  %v301 = vpack.c.b16 %v287, %v286
  %v302 = vpack.c.b16 %v289, %v288
  %v303 = vpack.c.b16 %v291, %v290
  %v304 = vpack.c.b16 %v293, %v292
  %v305 = vpack.c.b16 %v295, %v294
  %v306 = vpack.c.b16 %v297, %v296
  %v307 = vpack.c.b16 %v299, %v298
  %316 = vmatprep.subr.bf16.mxu0 0
  %317 = vmatpush1.bf16.msra.mxu0 %v300
  %318 = vmatprep.subr.bf16.mxu0 0
  %319 = vmatpush1.bf16.msra.mxu0 %v301
  %320 = vmatprep.subr.bf16.mxu0 0
  %321 = vmatpush1.bf16.msra.mxu0 %v302
  %322 = vmatprep.subr.bf16.mxu0 0
  %323 = vmatpush1.bf16.msra.mxu0 %v303
  %324 = vmatprep.subr.bf16.mxu0 0
  %325 = vmatpush1.bf16.msra.mxu0 %v304
  %326 = vmatprep.subr.bf16.mxu0 0
  %327 = vmatpush1.bf16.msra.mxu0 %v305
  %328 = vmatprep.subr.bf16.mxu0 0
  %329 = vmatpush1.bf16.msra.mxu0 %v306
  %330 = vmatprep.subr.bf16.mxu0 0
  %331 = vmatpush1.bf16.msra.mxu0 %v307
  %332 = vmatprep.subr.bf16.mxu0 0
  %333 = vmatpush1.bf16.msra.mxu0 0
  %334 = vmatprep.subr.bf16.mxu0 0
  %335 = vmatpush1.bf16.msra.mxu0 0
  %336 = vmatprep.subr.bf16.mxu0 0
  %337 = vmatpush1.bf16.msra.mxu0 0
  %338 = vmatprep.subr.bf16.mxu0 0
  %339 = vmatpush1.bf16.msra.mxu0 0
  %340 = vmatprep.subr.bf16.mxu0 0
  %341 = vmatpush1.bf16.msra.mxu0 0
  %342 = vmatprep.subr.bf16.mxu0 0
  %343 = vmatpush1.bf16.msra.mxu0 0
  %344 = vmatprep.subr.bf16.mxu0 0
  %345 = vmatpush1.bf16.msra.mxu0 0
  %346 = vmatprep.subr.bf16.mxu0 0
  %347 = vmatpush1.bf16.msra.mxu0 0
  %348 = vmatprep.mubr.bf16.mxu0 0
  %349 = vmatmul.mubr.bf16.gmra.mrb[0].mxu0 %v237
  %v350 = vpop.f32.mrb[0].mxu0
  %v351 = vadd.f32 %v266, %v350
  %v352 = vpop.f32.mrb[0].mxu0
  %v353 = vpop.f32.mrb[0].mxu0
  %v354 = vadd.f32 %v266, %v353
  %v355 = vpop.f32.mrb[0].mxu0
  %356 = vmatprep.mubr.bf16.mxu0 0
  %357 = vmatmul.mubr.bf16.gmra.mrb[0].mxu0 %v238
  %v358 = vpop.f32.mrb[0].mxu0
  %v359 = vadd.f32 %v266, %v358
  %v360 = vpop.f32.mrb[0].mxu0
  %v361 = vpop.f32.mrb[0].mxu0
  %v362 = vadd.f32 %v266, %v361
  %v363 = vpop.f32.mrb[0].mxu0
  %364 = vmatprep.mubr.bf16.mxu0 0
  %365 = vmatmul.mubr.bf16.gmra.mrb[0].mxu0 %v239
  %v366 = vpop.f32.mrb[0].mxu0
  %v367 = vadd.f32 %v266, %v366
  %v368 = vpop.f32.mrb[0].mxu0
  %v369 = vpop.f32.mrb[0].mxu0
  %v370 = vadd.f32 %v266, %v369
  %v371 = vpop.f32.mrb[0].mxu0
  %372 = vmatprep.mubr.bf16.mxu0 0
  %373 = vmatmul.mubr.bf16.gmra.mrb[0].mxu0 %v240
  %v374 = vpop.f32.mrb[0].mxu0
  %v375 = vadd.f32 %v266, %v374
  %v376 = vpop.f32.mrb[0].mxu0
  %v377 = vpop.f32.mrb[0].mxu0
  %v378 = vadd.f32 %v266, %v377
  %v379 = vpop.f32.mrb[0].mxu0
  %380 = vmatprep.mubr.bf16.mxu0 0
  %381 = vmatmul.mubr.bf16.gmra.mrb[0].mxu0 %v241
  %v382 = vpop.f32.mrb[0].mxu0
  %v383 = vadd.f32 %v266, %v382
  %v384 = vpop.f32.mrb[0].mxu0
  %v385 = vpop.f32.mrb[0].mxu0
  %v386 = vadd.f32 %v266, %v385
  %v387 = vpop.f32.mrb[0].mxu0
  %388 = vmatprep.mubr.bf16.mxu0 0
  %389 = vmatmul.mubr.bf16.gmra.mrb[0].mxu0 %v242
  %v390 = vpop.f32.mrb[0].mxu0
  %v391 = vadd.f32 %v266, %v390
  %v392 = vpop.f32.mrb[0].mxu0
  %v393 = vpop.f32.mrb[0].mxu0
  %v394 = vadd.f32 %v266, %v393
  %v395 = vpop.f32.mrb[0].mxu0
  %396 = vmatprep.mubr.bf16.mxu0 0
  %397 = vmatmul.mubr.bf16.gmra.mrb[0].mxu0 %v243
  %v398 = vpop.f32.mrb[0].mxu0
  %v399 = vadd.f32 %v266, %v398
  %v400 = vpop.f32.mrb[0].mxu0
  %v401 = vpop.f32.mrb[0].mxu0
  %v402 = vadd.f32 %v266, %v401
  %v403 = vpop.f32.mrb[0].mxu0
  %404 = vmatprep.mubr.bf16.mxu0 0
  %405 = vmatmul.mubr.bf16.gmra.mrb[0].mxu0 %v244
  %v406 = vpop.f32.mrb[0].mxu0
  %v407 = vadd.f32 %v266, %v406
  %v408 = vpop.f32.mrb[0].mxu0
  %v409 = vpop.f32.mrb[0].mxu0
  %v410 = vadd.f32 %v266, %v409
  %v411 = vpop.f32.mrb[0].mxu0
  %412 = vdwg.mxu0
  %v413 = vmax.f32 %v351, 0.0
  %v414 = vmax.f32 %v354, 0.0
  %v415 = vmax.f32 %v359, 0.0
  %v416 = vmax.f32 %v362, 0.0
  %v417 = vmax.f32 %v367, 0.0
  %v418 = vmax.f32 %v370, 0.0
  %v419 = vmax.f32 %v375, 0.0
  %v420 = vmax.f32 %v378, 0.0
  %v421 = vmax.f32 %v383, 0.0
  %v422 = vmax.f32 %v386, 0.0
  %v423 = vmax.f32 %v391, 0.0
  %v424 = vmax.f32 %v394, 0.0
  %v425 = vmax.f32 %v399, 0.0
  %v426 = vmax.f32 %v402, 0.0
  %v427 = vmax.f32 %v407, 0.0
  %v428 = vmax.f32 %v410, 0.0
  %v429 = vld [vmem:[%s5] sm:$0x1]
  %v431 = vlaneseq
  %v432 = vshrl.u32 %v431, 7
  %v433 = vsub.s32 0, %v432
  %v434 = vrot.slane %v429, %v433
  %v436 = vmul.f32 %v413, %v434
  %v437 = vmul.f32 %v414, %v434
  %v438 = vmul.f32 %v415, %v434
  %v439 = vmul.f32 %v416, %v434
  %v440 = vmul.f32 %v417, %v434
  %v441 = vmul.f32 %v418, %v434
  %v442 = vmul.f32 %v419, %v434
  %v443 = vmul.f32 %v420, %v434
  %v444 = vmul.f32 %v421, %v434
  %v445 = vmul.f32 %v422, %v434
  %v446 = vmul.f32 %v423, %v434
  %v447 = vmul.f32 %v424, %v434
  %v448 = vmul.f32 %v425, %v434
  %v449 = vmul.f32 %v426, %v434
  %v450 = vmul.f32 %v427, %v434
  %v451 = vmul.f32 %v428, %v434
  %452 = vadd.xlane.f32.xlu0 %v436
  %v453 = vpop.xlane.xlu0 %452
  %454 = vadd.xlane.f32.xlu0 %v437
  %v455 = vpop.xlane.xlu0 %454
  %456 = vadd.xlane.f32.xlu0 %v438
  %v457 = vpop.xlane.xlu0 %456
  %458 = vadd.xlane.f32.xlu0 %v439
  %v459 = vpop.xlane.xlu0 %458
  %460 = vadd.xlane.f32.xlu0 %v440
  %v461 = vpop.xlane.xlu0 %460
  %462 = vadd.xlane.f32.xlu0 %v441
  %v463 = vpop.xlane.xlu0 %462
  %464 = vadd.xlane.f32.xlu0 %v442
  %v465 = vpop.xlane.xlu0 %464
  %466 = vadd.xlane.f32.xlu0 %v443
  %v467 = vpop.xlane.xlu0 %466
  %468 = vadd.xlane.f32.xlu0 %v444
  %v469 = vpop.xlane.xlu0 %468
  %470 = vadd.xlane.f32.xlu0 %v445
  %v471 = vpop.xlane.xlu0 %470
  %472 = vadd.xlane.f32.xlu0 %v446
  %v473 = vpop.xlane.xlu0 %472
  %474 = vadd.xlane.f32.xlu0 %v447
  %v475 = vpop.xlane.xlu0 %474
  %476 = vadd.xlane.f32.xlu0 %v448
  %v477 = vpop.xlane.xlu0 %476
  %478 = vadd.xlane.f32.xlu0 %v449
  %v479 = vpop.xlane.xlu0 %478
  %480 = vadd.xlane.f32.xlu0 %v450
  %v481 = vpop.xlane.xlu0 %480
  %482 = vadd.xlane.f32.xlu0 %v451
  %v483 = vpop.xlane.xlu0 %482
  %s484 = sld [smem:[#allocation2]]
  %v485 = vstv %s484
  %v486 = vadd.f32 %v453, %v485
  %v487 = vadd.f32 %v455, %v485
  %v488 = vadd.f32 %v457, %v485
  %v489 = vadd.f32 %v459, %v485
  %v490 = vadd.f32 %v461, %v485
  %v491 = vadd.f32 %v463, %v485
  %v492 = vadd.f32 %v465, %v485
  %v493 = vadd.f32 %v467, %v485
  %v494 = vadd.f32 %v469, %v485
  %v495 = vadd.f32 %v471, %v485
  %v496 = vadd.f32 %v473, %v485
  %v497 = vadd.f32 %v475, %v485
  %v498 = vadd.f32 %v477, %v485
  %v499 = vadd.f32 %v479, %v485
  %v500 = vadd.f32 %v481, %v485
  %v501 = vadd.f32 %v483, %v485
  %vm502 = vcmask 7168
  %503 = vst.msk [vmem:[%s7] sm:$0xff] %vm502, %v486
  %504 = vst.msk [vmem:[%s7 + $0x8] sm:$0xff] %vm502, %v487
  %505 = vst.msk [vmem:[%s7 + $0x10] sm:$0xff] %vm502, %v488
  %506 = vst.msk [vmem:[%s7 + $0x18] sm:$0xff] %vm502, %v489
  %507 = vst.msk [vmem:[%s7 + $0x20] sm:$0xff] %vm502, %v490
  %508 = vst.msk [vmem:[%s7 + $0x28] sm:$0xff] %vm502, %v491
  %509 = vst.msk [vmem:[%s7 + $0x30] sm:$0xff] %vm502, %v492
  %510 = vst.msk [vmem:[%s7 + $0x38] sm:$0xff] %vm502, %v493
  %511 = vst.msk [vmem:[%s7 + $0x40] sm:$0xff] %vm502, %v494
  %512 = vst.msk [vmem:[%s7 + $0x48] sm:$0xff] %vm502, %v495
  %513 = vst.msk [vmem:[%s7 + $0x50] sm:$0xff] %vm502, %v496
  %514 = vst.msk [vmem:[%s7 + $0x58] sm:$0xff] %vm502, %v497
  %515 = vst.msk [vmem:[%s7 + $0x60] sm:$0xff] %vm502, %v498
  %516 = vst.msk [vmem:[%s7 + $0x68] sm:$0xff] %vm502, %v499
  %517 = vst.msk [vmem:[%s7 + $0x70] sm:$0xff] %vm502, %v500
  %518 = vst.msk [vmem:[%s7 + $0x78] sm:$0xff] %vm502, %v501
  // Predicated region
  $region30: #{tpu_custom_call.1} parent=0 // pred_check
    _
  $region31: #{tpu_custom_call.1} parent=0 // pred_check_branch
    %520 = sbr.rel (0) target = $region33
  $region32: #{tpu_custom_call.1} parent=0 // pred_region
    _
  $region33: #{tpu_custom_call.1} parent=0 // pred_fallthru
    _
  // Predicated region
  $region34: #{tpu_custom_call.1} parent=0 // pred_check
    _
  $region35: #{tpu_custom_call.1} parent=0 // pred_check_branch
    %522 = sbr.rel (0) target = $region37
  $region36: #{tpu_custom_call.1} parent=0 // pred_region
    _
  $region37: #{tpu_custom_call.1} parent=0 // pred_fallthru
    _

</llo_original>
